<compile_context>
chip_gen: v7x
topology: tpu7x:2x2x1
jax: 0.10.0
libtpu: 0.0.40
codegen_flags: <defaults>
</compile_context>

<pallas_src>
import functools

import jax
import jax.numpy as jnp
from jax.experimental import pallas as pl
from jax.experimental.pallas import tpu as pltpu


def pre_adanorm_kernel(x_ref, shift_ref, scale_ref, g_ref, b_ref, o_ref, *, eps):
    x = x_ref[...].astype(jnp.float32)           # (BB, TS, D)
    shift = shift_ref[...].astype(jnp.float32)   # (BB, 1, D)
    scale = scale_ref[...].astype(jnp.float32)   # (BB, 1, D)
    g = g_ref[...].astype(jnp.float32)           # (1, 1, D)
    b = b_ref[...].astype(jnp.float32)           # (1, 1, D)

    # Fuse the LayerNorm affine with the adaLN modulate:
    #   LN(x)*(1+scale) + shift == (x-mu)*inv_std * (g*(1+scale)) + (b*(1+scale)+shift)
    one_plus_scale = 1.0 + scale
    eff_scale = g * one_plus_scale               # (BB, 1, D)
    eff_bias = b * one_plus_scale + shift        # (BB, 1, D)

    # nn.LayerNorm: biased variance, eps inside the rsqrt.
    mu = jnp.mean(x, axis=-1, keepdims=True)
    d = x - mu                                   # reused for var and normalization
    var = jnp.mean(d * d, axis=-1, keepdims=True)
    inv_std = jax.lax.rsqrt(var + eps)

    o_ref[...] = ((d * inv_std) * eff_scale + eff_bias).astype(o_ref.dtype)


def _choose_seq_tile(S, target_rows=512):
    """Largest multiple of 8 that divides S and is <= target_rows; else S."""
    if S <= target_rows:
        return S
    for ts in range(target_rows, 7, -1):
        if ts % 8 == 0 and S % ts == 0:
            return ts
    return S


def pre_adanorm(x, shift, scale, ln_weight, ln_bias, *, eps=1e-5):
    """x: (B, S, D); shift, scale: (B, D); ln_weight, ln_bias: (D,).

    Returns (x, norm_x) matching PreAdanorm.forward.
    """
    B, S, D = x.shape
    shift3 = shift.reshape(B, 1, D)
    scale3 = scale.reshape(B, 1, D)
    g3 = ln_weight.reshape(1, 1, D)
    b3 = ln_bias.reshape(1, 1, D)

    itemsize = jnp.dtype(x.dtype).itemsize
    flops = 8 * B * S * D
    bytes_accessed = itemsize * (2 * B * S * D + 2 * B * D) + 2 * D * jnp.dtype(
        ln_weight.dtype).itemsize
    cost = pl.CostEstimate(flops=flops, transcendentals=B * S,
                           bytes_accessed=bytes_accessed)

    kernel = functools.partial(pre_adanorm_kernel, eps=eps)
    total_bytes = B * S * D * itemsize

    if total_bytes <= (512 << 10):
        # Tiny-shape path: one grid step, whole problem resident in VMEM.
        norm_x = pl.pallas_call(
            kernel,
            out_shape=jax.ShapeDtypeStruct((B, S, D), x.dtype),
            grid=(1,),
            in_specs=[
                pl.BlockSpec((B, S, D), lambda i: (0, 0, 0)),   # x
                pl.BlockSpec((B, 1, D), lambda i: (0, 0, 0)),   # shift
                pl.BlockSpec((B, 1, D), lambda i: (0, 0, 0)),   # scale
                pl.BlockSpec((1, 1, D), lambda i: (0, 0, 0)),   # LN gamma
                pl.BlockSpec((1, 1, D), lambda i: (0, 0, 0)),   # LN beta
            ],
            out_specs=pl.BlockSpec((B, S, D), lambda i: (0, 0, 0)),
            compiler_params=pltpu.CompilerParams(
                dimension_semantics=("arbitrary",)),
            cost_estimate=cost,
        )(x, shift3, scale3, g3, b3)
        return x, norm_x

    # Production path: tile the sequence axis so the pipeline has a steady
    # state and blocks fit v7x's VMEM; both axes parallel for megacore.
    TS = _choose_seq_tile(S)
    n_s = S // TS

    # Double-buffered input + output blocks; raise scoped VMEM if needed
    # (v5e default is 16 MiB).
    block_bytes = TS * D * itemsize
    compiler_kwargs = dict(dimension_semantics=("parallel", "parallel"))
    needed = 4 * block_bytes + (2 << 20)
    if needed > (16 << 20):
        compiler_kwargs["vmem_limit_bytes"] = min(needed * 2, 100 << 20)

    norm_x = pl.pallas_call(
        kernel,
        out_shape=jax.ShapeDtypeStruct((B, S, D), x.dtype),
        grid=(B, n_s),
        in_specs=[
            pl.BlockSpec((1, TS, D), lambda b, s: (b, s, 0)),   # x
            pl.BlockSpec((1, 1, D), lambda b, s: (b, 0, 0)),    # shift
            pl.BlockSpec((1, 1, D), lambda b, s: (b, 0, 0)),    # scale
            pl.BlockSpec((1, 1, D), lambda b, s: (0, 0, 0)),    # LN gamma (shared)
            pl.BlockSpec((1, 1, D), lambda b, s: (0, 0, 0)),    # LN beta  (shared)
        ],
        out_specs=pl.BlockSpec((1, TS, D), lambda b, s: (b, s, 0)),
        compiler_params=pltpu.CompilerParams(**compiler_kwargs),
        cost_estimate=cost,
    )(x, shift3, scale3, g3, b3)

    # PreAdanorm returns the input x unchanged as the first element.
    return x, norm_x


def _reference(x, shift, scale, ln_weight, ln_bias, eps=1e-5):
    mu = jnp.mean(x, axis=-1, keepdims=True)
    var = jnp.mean((x - mu) ** 2, axis=-1, keepdims=True)
    nx = (x - mu) / jnp.sqrt(var + eps) * ln_weight + ln_bias
    return nx * (1.0 + scale[:, None, :]) + shift[:, None, :]


def _run_case(B, S, D, key):
    kx, ksh, ksc, kg, kb = jax.random.split(key, 5)
    x = jax.random.normal(kx, (B, S, D), jnp.float32)
    shift = jax.random.normal(ksh, (B, D), jnp.float32)
    scale = jax.random.normal(ksc, (B, D), jnp.float32)
    ln_w = 1.0 + 0.1 * jax.random.normal(kg, (D,), jnp.float32)
    ln_b = 0.1 * jax.random.normal(kb, (D,), jnp.float32)

    fwd = jax.jit(pre_adanorm)
    x_out, norm_x = fwd(x, shift, scale, ln_w, ln_b)
    jax.block_until_ready(norm_x)

    ref = _reference(x, shift, scale, ln_w, ln_b)
    assert x_out.shape == (B, S, D) and norm_x.shape == (B, S, D)
    assert norm_x.dtype == jnp.float32
    assert bool(jnp.all(jnp.isfinite(norm_x)))
    assert bool(jnp.allclose(x_out, x))
    assert bool(jnp.allclose(norm_x, ref, atol=1e-5, rtol=1e-5)), \
        float(jnp.max(jnp.abs(norm_x - ref)))


if __name__ == "__main__":
    key = jax.random.PRNGKey(0)
    k1, k2 = jax.random.split(key)
    # Small shape (single-grid-step fast path).
    _run_case(2, 64, 128, k1)
    # Larger shape exercising the tiled (B, S//TS) pipelined path.
    _run_case(2, 2048, 128, k2)
    print("KERNEL_OK")
</pallas_src>

<mosaic_0001>
module attributes {stable_mosaic.version = 11 : i64} {
  func.func @pre_adanorm_kernel(%arg0: i32, %arg1: memref<2x64x128xf32, #tpu.memory_space<vmem>>, %arg2: memref<2x1x128xf32, #tpu.memory_space<vmem>>, %arg3: memref<2x1x128xf32, #tpu.memory_space<vmem>>, %arg4: memref<1x1x128xf32, #tpu.memory_space<vmem>>, %arg5: memref<1x1x128xf32, #tpu.memory_space<vmem>>, %arg6: memref<2x64x128xf32, #tpu.memory_space<vmem>>) attributes {dimension_semantics = [#tpu.dimension_semantics<arbitrary>], iteration_bounds = array<i64: 1>, scalar_prefetch = 0 : i64, scratch_operands = 0 : i64, tpu.core_type = #tpu.core_type<tc>, window_params = [{pipeline_mode = #tpu.pipeline_mode<synchronous>, transform_indices = @transform_0, window_bounds = array<i64: 2, 64, 128>}, {pipeline_mode = #tpu.pipeline_mode<synchronous>, transform_indices = @transform_1, window_bounds = array<i64: 2, 1, 128>}, {pipeline_mode = #tpu.pipeline_mode<synchronous>, transform_indices = @transform_2, window_bounds = array<i64: 2, 1, 128>}, {pipeline_mode = #tpu.pipeline_mode<synchronous>, transform_indices = @transform_3, window_bounds = array<i64: 1, 1, 128>}, {pipeline_mode = #tpu.pipeline_mode<synchronous>, transform_indices = @transform_4, window_bounds = array<i64: 1, 1, 128>}, {pipeline_mode = #tpu.pipeline_mode<synchronous>, transform_indices = @transform_5, window_bounds = array<i64: 2, 64, 128>}]} {
    %c0 = arith.constant 0 : index
    %c0_0 = arith.constant 0 : index
    %c0_1 = arith.constant 0 : index
    %0 = vector.load %arg1[%c0, %c0_0, %c0_1] : memref<2x64x128xf32, #tpu.memory_space<vmem>>, vector<2x64x128xf32>
    %c0_2 = arith.constant 0 : index
    %c0_3 = arith.constant 0 : index
    %c0_4 = arith.constant 0 : index
    %1 = vector.load %arg2[%c0_2, %c0_3, %c0_4] : memref<2x1x128xf32, #tpu.memory_space<vmem>>, vector<2x1x128xf32>
    %c0_5 = arith.constant 0 : index
    %c0_6 = arith.constant 0 : index
    %c0_7 = arith.constant 0 : index
    %2 = vector.load %arg3[%c0_5, %c0_6, %c0_7] : memref<2x1x128xf32, #tpu.memory_space<vmem>>, vector<2x1x128xf32>
    %c0_8 = arith.constant 0 : index
    %c0_9 = arith.constant 0 : index
    %c0_10 = arith.constant 0 : index
    %3 = vector.load %arg4[%c0_8, %c0_9, %c0_10] : memref<1x1x128xf32, #tpu.memory_space<vmem>>, vector<1x1x128xf32>
    %c0_11 = arith.constant 0 : index
    %c0_12 = arith.constant 0 : index
    %c0_13 = arith.constant 0 : index
    %4 = vector.load %arg5[%c0_11, %c0_12, %c0_13] : memref<1x1x128xf32, #tpu.memory_space<vmem>>, vector<1x1x128xf32>
    %cst = arith.constant 1.000000e+00 : f32
    %5 = vector.broadcast %cst : f32 to vector<2x1x128xf32>
    %6 = arith.addf %5, %2 : vector<2x1x128xf32>
    %7 = vector.broadcast %3 : vector<1x1x128xf32> to vector<2x1x128xf32>
    %8 = arith.mulf %7, %6 : vector<2x1x128xf32>
    %9 = vector.broadcast %4 : vector<1x1x128xf32> to vector<2x1x128xf32>
    %10 = arith.mulf %9, %6 : vector<2x1x128xf32>
    %11 = arith.addf %10, %1 : vector<2x1x128xf32>
    %cst_14 = arith.constant dense<0.000000e+00> : vector<2x64xf32>
    %12 = vector.multi_reduction <add>, %0, %cst_14 [2] : vector<2x64x128xf32> to vector<2x64xf32>
    %13 = vector.shape_cast %12 : vector<2x64xf32> to vector<2x64x1xf32>
    %cst_15 = arith.constant 1.280000e+02 : f32
    %14 = vector.broadcast %cst_15 : f32 to vector<2x64x1xf32>
    %15 = arith.divf %13, %14 : vector<2x64x1xf32>
    %16 = vector.broadcast %15 : vector<2x64x1xf32> to vector<2x64x128xf32>
    %17 = arith.subf %0, %16 : vector<2x64x128xf32>
    %18 = arith.mulf %17, %17 : vector<2x64x128xf32>
    %cst_16 = arith.constant dense<0.000000e+00> : vector<2x64xf32>
    %19 = vector.multi_reduction <add>, %18, %cst_16 [2] : vector<2x64x128xf32> to vector<2x64xf32>
    %20 = vector.shape_cast %19 : vector<2x64xf32> to vector<2x64x1xf32>
    %cst_17 = arith.constant 1.280000e+02 : f32
    %21 = vector.broadcast %cst_17 : f32 to vector<2x64x1xf32>
    %22 = arith.divf %20, %21 : vector<2x64x1xf32>
    %cst_18 = arith.constant 9.99999974E-6 : f32
    %23 = vector.broadcast %cst_18 : f32 to vector<2x64x1xf32>
    %24 = arith.addf %22, %23 : vector<2x64x1xf32>
    %25 = math.rsqrt %24 : vector<2x64x1xf32>
    %26 = vector.broadcast %25 : vector<2x64x1xf32> to vector<2x64x128xf32>
    %27 = arith.mulf %17, %26 : vector<2x64x128xf32>
    %28 = vector.broadcast %8 : vector<2x1x128xf32> to vector<2x64x128xf32>
    %29 = arith.mulf %27, %28 : vector<2x64x128xf32>
    %30 = vector.broadcast %11 : vector<2x1x128xf32> to vector<2x64x128xf32>
    %31 = arith.addf %29, %30 : vector<2x64x128xf32>
    %c0_19 = arith.constant 0 : index
    %c0_20 = arith.constant 0 : index
    %c0_21 = arith.constant 0 : index
    %32 = vector.load %arg6[%c0_19, %c0_20, %c0_21] : memref<2x64x128xf32, #tpu.memory_space<vmem>>, vector<2x64x128xf32>
    tpu.vector_store %arg6[%c0_19, %c0_20, %c0_21], %31 {strides = array<i32>} : memref<2x64x128xf32, #tpu.memory_space<vmem>>, vector<2x64x128xf32>,
    return
  }
  func.func @transform_0(%arg0: i32) -> (i32, i32, i32) {
    %c0_i32 = arith.constant 0 : i32
    %c0_i32_0 = arith.constant 0 : i32
    %c0_i32_1 = arith.constant 0 : i32
    %c0_i32_2 = arith.constant 0 : i32
    return %c0_i32, %c0_i32_0, %c0_i32_1 : i32, i32, i32
  }
  func.func @transform_1(%arg0: i32) -> (i32, i32, i32) {
    %c0_i32 = arith.constant 0 : i32
    %c0_i32_0 = arith.constant 0 : i32
    %c0_i32_1 = arith.constant 0 : i32
    %c0_i32_2 = arith.constant 0 : i32
    return %c0_i32, %c0_i32_0, %c0_i32_1 : i32, i32, i32
  }
  func.func @transform_2(%arg0: i32) -> (i32, i32, i32) {
    %c0_i32 = arith.constant 0 : i32
    %c0_i32_0 = arith.constant 0 : i32
    %c0_i32_1 = arith.constant 0 : i32
    %c0_i32_2 = arith.constant 0 : i32
    return %c0_i32, %c0_i32_0, %c0_i32_1 : i32, i32, i32
  }
  func.func @transform_3(%arg0: i32) -> (i32, i32, i32) {
    %c0_i32 = arith.constant 0 : i32
    %c0_i32_0 = arith.constant 0 : i32
    %c0_i32_1 = arith.constant 0 : i32
    %c0_i32_2 = arith.constant 0 : i32
    return %c0_i32, %c0_i32_0, %c0_i32_1 : i32, i32, i32
  }
  func.func @transform_4(%arg0: i32) -> (i32, i32, i32) {
    %c0_i32 = arith.constant 0 : i32
    %c0_i32_0 = arith.constant 0 : i32
    %c0_i32_1 = arith.constant 0 : i32
    %c0_i32_2 = arith.constant 0 : i32
    return %c0_i32, %c0_i32_0, %c0_i32_1 : i32, i32, i32
  }
  func.func @transform_5(%arg0: i32) -> (i32, i32, i32) {
    %c0_i32 = arith.constant 0 : i32
    %c0_i32_0 = arith.constant 0 : i32
    %c0_i32_1 = arith.constant 0 : i32
    %c0_i32_2 = arith.constant 0 : i32
    return %c0_i32, %c0_i32_0, %c0_i32_1 : i32, i32, i32
  }
}

</mosaic_0001>

<llo_original>
// kernel: pre_adanorm.1
$region0: #{pre_adanorm.1}
  #allocation0 [shape = 'u32[]', space=smem, size = 0x4, offset = 0x4, fixed_abs, tag = 'smem constant byte address 0x4 - core index']
  #allocation1 [shape = 'u32[144,128]{1,0:T(1,128)}', space=vmem, size = 0x12000, scoped, tag = 'internal scratch']
  %s0 = inlined_call_operand.hbm [shape: f32[2,64,128], index: 0, kind: input, shape index: {}]
  %s1 = inlined_call_operand.vmem [shape: f32[2,1,128], index: 1, kind: input, shape index: {}]
  %s2 = inlined_call_operand.vmem [shape: f32[2,1,128], index: 2, kind: input, shape index: {}]
  %s3 = inlined_call_operand.vmem [shape: f32[1,1,128], index: 3, kind: input, shape index: {}]
  %s4 = inlined_call_operand.vmem [shape: f32[1,1,128], index: 4, kind: input, shape index: {}]
  %s5 = inlined_call_operand.hbm [shape: f32[2,64,128], index: 5, kind: output, shape index: {}]
  %s6 = sld [smem:[#allocation0]]
  $region34: #{pre_adanorm.1} parent=0
    _
  %s8 = ssub.s32 1, %s6
  %s9 = scalar_select 0, %s8, %s6
  $region1: #{pre_adanorm.1} parent=0
    #allocation2 [shape = 'u8[65536]{0}', space=vmem, size = 0x10000, scoped, tag = 'input window, operand 0, single buffered']
    #allocation3 [shape = 's32[1]{0}', space=sflag, size = 0x4, scoped, tag = 'scoped memory for pre_adanorm.1']
    #allocation4 [shape = 's32[1]{0}', space=sflag, size = 0x4, scoped, tag = 'scoped memory for pre_adanorm.1']
    #allocation5 [shape = 'u8[65536]{0}', space=vmem, size = 0x10000, scoped, tag = 'output window, operand 0, single buffered']
    %10 = vsyncpa [#allocation3], 0
    %11 = vsyncpa [#allocation4], 0
    // Predicated region
    $region2: #{pre_adanorm.1} parent=1 // pred_check
      _
    $region3: #{pre_adanorm.1} parent=1 // pred_check_branch
      %13 = sbr.rel (0) target = $region5
    $region4: #{pre_adanorm.1} parent=1 // pred_region
      %s15 = ssub.s32 2048, 2048
      %16 = vsyncadd [#allocation3], %s15
      %s17 = sshll.u32 [#allocation2], 4
      %s18 = int_to_ptr.vmem [resolvable:$true] %s17
      %23 = dma.hbm_to_vmem [thread:$0]  %s0, 2048, %s18, [#allocation3], 128, 128, 8
    $region5: #{pre_adanorm.1} parent=1 // pred_fallthru
      _
    // Predicated region
    $region6: #{pre_adanorm.1} parent=1 // pred_check
      _
    $region7: #{pre_adanorm.1} parent=1 // pred_check_branch
      %25 = sbr.rel (0) target = $region9
    $region8: #{pre_adanorm.1} parent=1 // pred_region
      _
    $region9: #{pre_adanorm.1} parent=1 // pred_fallthru
      _
    // Predicated region
    $region10: #{pre_adanorm.1} parent=1 // pred_check
      _
    $region11: #{pre_adanorm.1} parent=1 // pred_check_branch
      %27 = sbr.rel (0) target = $region13
    $region12: #{pre_adanorm.1} parent=1 // pred_region
      _
    $region13: #{pre_adanorm.1} parent=1 // pred_fallthru
      _
    // Predicated region
    $region14: #{pre_adanorm.1} parent=1 // pred_check
      _
    $region15: #{pre_adanorm.1} parent=1 // pred_check_branch
      %29 = sbr.rel (0) target = $region17
    $region16: #{pre_adanorm.1} parent=1 // pred_region
      _
    $region17: #{pre_adanorm.1} parent=1 // pred_fallthru
      _
    // Predicated region
    $region18: #{pre_adanorm.1} parent=1 // pred_check
      _
    $region19: #{pre_adanorm.1} parent=1 // pred_check_branch
      %31 = sbr.rel (0) target = $region21
    $region20: #{pre_adanorm.1} parent=1 // pred_region
      _
    $region21: #{pre_adanorm.1} parent=1 // pred_fallthru
      _
    // Predicated region
    $region22: #{pre_adanorm.1} parent=1 // pred_check
      _
    $region23: #{pre_adanorm.1} parent=1 // pred_check_branch
      %33 = sbr.rel (0) target = $region25
    $region24: #{pre_adanorm.1} parent=1 // pred_region
      %34 = dma.done [#allocation3], 2048
    $region25: #{pre_adanorm.1} parent=1 // pred_fallthru
      _
    %v35 = vld [vmem:[#allocation2] sm:$0xff]
    %v36 = vld [vmem:[#allocation2 + $0x8] sm:$0xff]
    %v37 = vld [vmem:[#allocation2 + $0x10] sm:$0xff]
    %v38 = vld [vmem:[#allocation2 + $0x18] sm:$0xff]
    %v39 = vld [vmem:[#allocation2 + $0x20] sm:$0xff]
    %v40 = vld [vmem:[#allocation2 + $0x28] sm:$0xff]
    %v41 = vld [vmem:[#allocation2 + $0x30] sm:$0xff]
    %v42 = vld [vmem:[#allocation2 + $0x38] sm:$0xff]
    %v43 = vld [vmem:[#allocation2 + $0x40] sm:$0xff]
    %v44 = vld [vmem:[#allocation2 + $0x48] sm:$0xff]
    %v45 = vld [vmem:[#allocation2 + $0x50] sm:$0xff]
    %v46 = vld [vmem:[#allocation2 + $0x58] sm:$0xff]
    %v47 = vld [vmem:[#allocation2 + $0x60] sm:$0xff]
    %v48 = vld [vmem:[#allocation2 + $0x68] sm:$0xff]
    %v49 = vld [vmem:[#allocation2 + $0x70] sm:$0xff]
    %v50 = vld [vmem:[#allocation2 + $0x78] sm:$0xff]
    %v51 = vld [vmem:[%s1] sm:$0x1]
    %v52 = vld [vmem:[%s1 + $0x1] sm:$0x1]
    %v53 = vld [vmem:[%s2] sm:$0x1]
    %v54 = vld [vmem:[%s2 + $0x1] sm:$0x1]
    %v55 = vld [vmem:[%s3] sm:$0x1]
    %v56 = vld [vmem:[%s4] sm:$0x1]
    %v57 = vadd.f32 %v53, 1.0
    %v58 = vadd.f32 %v54, 1.0
    %v59 = vmul.f32 %v55, %v57
    %v60 = vmul.f32 %v55, %v58
    %v61 = vmul.f32 %v56, %v57
    %v62 = vmul.f32 %v56, %v58
    %v63 = vadd.f32 %v61, %v51
    %v64 = vadd.f32 %v62, %v52
    %65 = vadd.xlane.f32.xlu0 %v35
    %v66 = vpop.xlane.xlu0 %65
    %67 = vadd.xlane.f32.xlu0 %v36
    %v68 = vpop.xlane.xlu0 %67
    %69 = vadd.xlane.f32.xlu0 %v37
    %v70 = vpop.xlane.xlu0 %69
    %71 = vadd.xlane.f32.xlu0 %v38
    %v72 = vpop.xlane.xlu0 %71
    %73 = vadd.xlane.f32.xlu0 %v39
    %v74 = vpop.xlane.xlu0 %73
    %75 = vadd.xlane.f32.xlu0 %v40
    %v76 = vpop.xlane.xlu0 %75
    %77 = vadd.xlane.f32.xlu0 %v41
    %v78 = vpop.xlane.xlu0 %77
    %79 = vadd.xlane.f32.xlu0 %v42
    %v80 = vpop.xlane.xlu0 %79
    %81 = vadd.xlane.f32.xlu0 %v43
    %v82 = vpop.xlane.xlu0 %81
    %83 = vadd.xlane.f32.xlu0 %v44
    %v84 = vpop.xlane.xlu0 %83
    %85 = vadd.xlane.f32.xlu0 %v45
    %v86 = vpop.xlane.xlu0 %85
    %87 = vadd.xlane.f32.xlu0 %v46
    %v88 = vpop.xlane.xlu0 %87
    %89 = vadd.xlane.f32.xlu0 %v47
    %v90 = vpop.xlane.xlu0 %89
    %91 = vadd.xlane.f32.xlu0 %v48
    %v92 = vpop.xlane.xlu0 %91
    %93 = vadd.xlane.f32.xlu0 %v49
    %v94 = vpop.xlane.xlu0 %93
    %95 = vadd.xlane.f32.xlu0 %v50
    %v96 = vpop.xlane.xlu0 %95
    %v97 = vrcp.pop 128.0
    %v98 = vmul.f32 %v66, %v97
    %v99 = vmul.f32 %v68, %v97
    %v100 = vmul.f32 %v70, %v97
    %v101 = vmul.f32 %v72, %v97
    %v102 = vmul.f32 %v74, %v97
    %v103 = vmul.f32 %v76, %v97
    %v104 = vmul.f32 %v78, %v97
    %v105 = vmul.f32 %v80, %v97
    %v106 = vmul.f32 %v82, %v97
    %v107 = vmul.f32 %v84, %v97
    %v108 = vmul.f32 %v86, %v97
    %v109 = vmul.f32 %v88, %v97
    %v110 = vmul.f32 %v90, %v97
    %v111 = vmul.f32 %v92, %v97
    %v112 = vmul.f32 %v94, %v97
    %v113 = vmul.f32 %v96, %v97
    %v114 = vsub.f32 %v35, %v98
    %v115 = vsub.f32 %v36, %v99
    %v116 = vsub.f32 %v37, %v100
    %v117 = vsub.f32 %v38, %v101
    %v118 = vsub.f32 %v39, %v102
    %v119 = vsub.f32 %v40, %v103
    %v120 = vsub.f32 %v41, %v104
    %v121 = vsub.f32 %v42, %v105
    %v122 = vsub.f32 %v43, %v106
    %v123 = vsub.f32 %v44, %v107
    %v124 = vsub.f32 %v45, %v108
    %v125 = vsub.f32 %v46, %v109
    %v126 = vsub.f32 %v47, %v110
    %v127 = vsub.f32 %v48, %v111
    %v128 = vsub.f32 %v49, %v112
    %v129 = vsub.f32 %v50, %v113
    %v130 = vmul.f32 %v114, %v114
    %v131 = vmul.f32 %v115, %v115
    %v132 = vmul.f32 %v116, %v116
    %v133 = vmul.f32 %v117, %v117
    %v134 = vmul.f32 %v118, %v118
    %v135 = vmul.f32 %v119, %v119
    %v136 = vmul.f32 %v120, %v120
    %v137 = vmul.f32 %v121, %v121
    %v138 = vmul.f32 %v122, %v122
    %v139 = vmul.f32 %v123, %v123
    %v140 = vmul.f32 %v124, %v124
    %v141 = vmul.f32 %v125, %v125
    %v142 = vmul.f32 %v126, %v126
    %v143 = vmul.f32 %v127, %v127
    %v144 = vmul.f32 %v128, %v128
    %v145 = vmul.f32 %v129, %v129
    %146 = vadd.xlane.f32.xlu0 %v130
    %v147 = vpop.xlane.xlu0 %146
    %148 = vadd.xlane.f32.xlu0 %v131
    %v149 = vpop.xlane.xlu0 %148
    %150 = vadd.xlane.f32.xlu0 %v132
    %v151 = vpop.xlane.xlu0 %150
    %152 = vadd.xlane.f32.xlu0 %v133
    %v153 = vpop.xlane.xlu0 %152
    %154 = vadd.xlane.f32.xlu0 %v134
    %v155 = vpop.xlane.xlu0 %154
    %156 = vadd.xlane.f32.xlu0 %v135
    %v157 = vpop.xlane.xlu0 %156
    %158 = vadd.xlane.f32.xlu0 %v136
    %v159 = vpop.xlane.xlu0 %158
    %160 = vadd.xlane.f32.xlu0 %v137
    %v161 = vpop.xlane.xlu0 %160
    %162 = vadd.xlane.f32.xlu0 %v138
    %v163 = vpop.xlane.xlu0 %162
    %164 = vadd.xlane.f32.xlu0 %v139
    %v165 = vpop.xlane.xlu0 %164
    %166 = vadd.xlane.f32.xlu0 %v140
    %v167 = vpop.xlane.xlu0 %166
    %168 = vadd.xlane.f32.xlu0 %v141
    %v169 = vpop.xlane.xlu0 %168
    %170 = vadd.xlane.f32.xlu0 %v142
    %v171 = vpop.xlane.xlu0 %170
    %172 = vadd.xlane.f32.xlu0 %v143
    %v173 = vpop.xlane.xlu0 %172
    %174 = vadd.xlane.f32.xlu0 %v144
    %v175 = vpop.xlane.xlu0 %174
    %176 = vadd.xlane.f32.xlu0 %v145
    %v177 = vpop.xlane.xlu0 %176
    %v178 = vmul.f32 %v147, %v97
    %v179 = vmul.f32 %v149, %v97
    %v180 = vmul.f32 %v151, %v97
    %v181 = vmul.f32 %v153, %v97
    %v182 = vmul.f32 %v155, %v97
    %v183 = vmul.f32 %v157, %v97
    %v184 = vmul.f32 %v159, %v97
    %v185 = vmul.f32 %v161, %v97
    %v186 = vmul.f32 %v163, %v97
    %v187 = vmul.f32 %v165, %v97
    %v188 = vmul.f32 %v167, %v97
    %v189 = vmul.f32 %v169, %v97
    %v190 = vmul.f32 %v171, %v97
    %v191 = vmul.f32 %v173, %v97
    %v192 = vmul.f32 %v175, %v97
    %v193 = vmul.f32 %v177, %v97
    %v194 = vadd.f32 %v178, 1e-05
    %v195 = vadd.f32 %v179, 1e-05
    %v196 = vadd.f32 %v180, 1e-05
    %v197 = vadd.f32 %v181, 1e-05
    %v198 = vadd.f32 %v182, 1e-05
    %v199 = vadd.f32 %v183, 1e-05
    %v200 = vadd.f32 %v184, 1e-05
    %v201 = vadd.f32 %v185, 1e-05
    %v202 = vadd.f32 %v186, 1e-05
    %v203 = vadd.f32 %v187, 1e-05
    %v204 = vadd.f32 %v188, 1e-05
    %v205 = vadd.f32 %v189, 1e-05
    %v206 = vadd.f32 %v190, 1e-05
    %v207 = vadd.f32 %v191, 1e-05
    %v208 = vadd.f32 %v192, 1e-05
    %v209 = vadd.f32 %v193, 1e-05
    %v210 = vrsqrt.pop %v194
    %v211 = vrsqrt.pop %v195
    %v212 = vrsqrt.pop %v196
    %v213 = vrsqrt.pop %v197
    %v214 = vrsqrt.pop %v198
    %v215 = vrsqrt.pop %v199
    %v216 = vrsqrt.pop %v200
    %v217 = vrsqrt.pop %v201
    %v218 = vrsqrt.pop %v202
    %v219 = vrsqrt.pop %v203
    %v220 = vrsqrt.pop %v204
    %v221 = vrsqrt.pop %v205
    %v222 = vrsqrt.pop %v206
    %v223 = vrsqrt.pop %v207
    %v224 = vrsqrt.pop %v208
    %v225 = vrsqrt.pop %v209
    %v226 = vmul.f32 %v114, %v210
    %v227 = vmul.f32 %v115, %v211
    %v228 = vmul.f32 %v116, %v212
    %v229 = vmul.f32 %v117, %v213
    %v230 = vmul.f32 %v118, %v214
    %v231 = vmul.f32 %v119, %v215
    %v232 = vmul.f32 %v120, %v216
    %v233 = vmul.f32 %v121, %v217
    %v234 = vmul.f32 %v122, %v218
    %v235 = vmul.f32 %v123, %v219
    %v236 = vmul.f32 %v124, %v220
    %v237 = vmul.f32 %v125, %v221
    %v238 = vmul.f32 %v126, %v222
    %v239 = vmul.f32 %v127, %v223
    %v240 = vmul.f32 %v128, %v224
    %v241 = vmul.f32 %v129, %v225
    %v244 = vlaneseq
    %v245 = vshrl.u32 %v244, 7
    %v246 = vsub.s32 0, %v245
    %v247 = vrot.slane %v59, %v246
    %v248 = vlaneseq
    %v249 = vshrl.u32 %v248, 7
    %v250 = vsub.s32 0, %v249
    %v251 = vrot.slane %v60, %v250
    %v254 = vmul.f32 %v226, %v247
    %v255 = vmul.f32 %v227, %v247
    %v256 = vmul.f32 %v228, %v247
    %v257 = vmul.f32 %v229, %v247
    %v258 = vmul.f32 %v230, %v247
    %v259 = vmul.f32 %v231, %v247
    %v260 = vmul.f32 %v232, %v247
    %v261 = vmul.f32 %v233, %v247
    %v262 = vmul.f32 %v234, %v251
    %v263 = vmul.f32 %v235, %v251
    %v264 = vmul.f32 %v236, %v251
    %v265 = vmul.f32 %v237, %v251
    %v266 = vmul.f32 %v238, %v251
    %v267 = vmul.f32 %v239, %v251
    %v268 = vmul.f32 %v240, %v251
    %v269 = vmul.f32 %v241, %v251
    %v272 = vlaneseq
    %v273 = vshrl.u32 %v272, 7
    %v274 = vsub.s32 0, %v273
    %v275 = vrot.slane %v63, %v274
    %v276 = vlaneseq
    %v277 = vshrl.u32 %v276, 7
    %v278 = vsub.s32 0, %v277
    %v279 = vrot.slane %v64, %v278
    %v282 = vadd.f32 %v254, %v275
    %v283 = vadd.f32 %v255, %v275
    %v284 = vadd.f32 %v256, %v275
    %v285 = vadd.f32 %v257, %v275
    %v286 = vadd.f32 %v258, %v275
    %v287 = vadd.f32 %v259, %v275
    %v288 = vadd.f32 %v260, %v275
    %v289 = vadd.f32 %v261, %v275
    %v290 = vadd.f32 %v262, %v279
    %v291 = vadd.f32 %v263, %v279
    %v292 = vadd.f32 %v264, %v279
    %v293 = vadd.f32 %v265, %v279
    %v294 = vadd.f32 %v266, %v279
    %v295 = vadd.f32 %v267, %v279
    %v296 = vadd.f32 %v268, %v279
    %v297 = vadd.f32 %v269, %v279
    %298 = vst [vmem:[#allocation5] sm:$0xff] %v282
    %299 = vst [vmem:[#allocation5 + $0x8] sm:$0xff] %v283
    %300 = vst [vmem:[#allocation5 + $0x10] sm:$0xff] %v284
    %301 = vst [vmem:[#allocation5 + $0x18] sm:$0xff] %v285
    %302 = vst [vmem:[#allocation5 + $0x20] sm:$0xff] %v286
    %303 = vst [vmem:[#allocation5 + $0x28] sm:$0xff] %v287
    %304 = vst [vmem:[#allocation5 + $0x30] sm:$0xff] %v288
    %305 = vst [vmem:[#allocation5 + $0x38] sm:$0xff] %v289
    %306 = vst [vmem:[#allocation5 + $0x40] sm:$0xff] %v290
    %307 = vst [vmem:[#allocation5 + $0x48] sm:$0xff] %v291
    %308 = vst [vmem:[#allocation5 + $0x50] sm:$0xff] %v292
    %309 = vst [vmem:[#allocation5 + $0x58] sm:$0xff] %v293
    %310 = vst [vmem:[#allocation5 + $0x60] sm:$0xff] %v294
    %311 = vst [vmem:[#allocation5 + $0x68] sm:$0xff] %v295
    %312 = vst [vmem:[#allocation5 + $0x70] sm:$0xff] %v296
    %313 = vst [vmem:[#allocation5 + $0x78] sm:$0xff] %v297
    // Predicated region
    $region26: #{pre_adanorm.1} parent=1 // pred_check
      _
    $region27: #{pre_adanorm.1} parent=1 // pred_check_branch
      %315 = sbr.rel (0) target = $region29
    $region28: #{pre_adanorm.1} parent=1 // pred_region
      %s317 = ssub.s32 2048, 2048
      %318 = vsyncadd [#allocation4], %s317
      %s319 = sshll.u32 [#allocation5], 4
      %s320 = int_to_ptr.vmem [resolvable:$true] %s319
      %325 = dma.vmem_to_hbm [thread:$0]  %s320, 2048, %s5, [#allocation4], 128, 128, 8
    $region29: #{pre_adanorm.1} parent=1 // pred_fallthru
      _
    // Predicated region
    $region30: #{pre_adanorm.1} parent=1 // pred_check
      _
    $region31: #{pre_adanorm.1} parent=1 // pred_check_branch
      %327 = sbr.rel (0) target = $region33
    $region32: #{pre_adanorm.1} parent=1 // pred_region
      %328 = dma.done [#allocation4], 2048
    $region33: #{pre_adanorm.1} parent=1 // pred_fallthru
      _
    %329 = vsyncpa [#allocation3], 1
    %330 = vsyncpa [#allocation4], 1

</llo_original>
